<compile_context>
chip_gen: v7x
topology: tpu7x:2x2x1
jax: 0.10.0
libtpu: 0.0.40
codegen_flags: <defaults>
</compile_context>

<pallas_src>
import functools

import jax
import jax.numpy as jnp
from jax import lax
from jax.experimental import pallas as pl
from jax.experimental.pallas import tpu as pltpu


_SQRT_HALF = 0.7071067811865476      # 1/sqrt(2)
_TANH_GELU_C = 0.7978845608028654    # sqrt(2/pi)


def _round_up(x, m):
    return ((x + m - 1) // m) * m


def _gelu_exact(x):
    # PyTorch nn.GELU() default: 0.5 * x * (1 + erf(x / sqrt(2))).
    # erf lowers to a long VALU polynomial -> only for exact-parity mode.
    return 0.5 * x * (1.0 + lax.erf(x * _SQRT_HALF))


def _gelu_tanh(x):
    # tanh approximation (PyTorch GELU(approximate='tanh')): routes the
    # transcendental to the EUP slot instead of saturating the VALU.
    return 0.5 * x * (1.0 + jnp.tanh(_TANH_GELU_C * (x + 0.044715 * x * x * x)))


def _policy_mlp_kernel(x_ref, w1_ref, b1_ref, w2_ref, b2_ref, w3_ref, b3_ref,
                       o_ref, *, matmul_dtype, approximate_gelu):
    gelu = _gelu_tanh if approximate_gelu else _gelu_exact

    # Weights already arrive in matmul_dtype (cast once in the wrapper); only
    # the streamed activations are cast per tile. Accumulation stays f32.
    x = x_ref[...].astype(matmul_dtype)

    h1 = jnp.dot(x, w1_ref[...], preferred_element_type=jnp.float32) + b1_ref[...]
    h1 = gelu(h1)

    h2 = jnp.dot(h1.astype(matmul_dtype), w2_ref[...],
                 preferred_element_type=jnp.float32) + b2_ref[...]
    h2 = gelu(h2)

    out = jnp.dot(h2.astype(matmul_dtype), w3_ref[...],
                  preferred_element_type=jnp.float32) + b3_ref[...]
    o_ref[...] = out.astype(o_ref.dtype)


def _plan_batch_tiling(B, block_b):
    """Pick (tile_b, padded_B).

    Prefers a tile that exactly divides the 8-aligned batch (no input pad, no
    output slice copy) and, when the batch allows it, >= 2 grid steps so the
    'parallel' batch axis shards across both v7x TensorCores.
    """
    B_p = _round_up(B, 8)
    max_tile = min(block_b, B_p)
    if B_p >= 16:                      # leave room for >= 2 grid steps
        max_tile = min(max_tile, B_p // 2)
    max_tile = max(8, (max_tile // 8) * 8)

    for t in range(max_tile, 7, -8):   # largest divisor tile (multiple of 8)
        if B_p % t == 0:
            if 2 * t >= max_tile:      # close enough to the desired tile size
                return t, B_p
            break
    # Awkward batch: pad up to a multiple of the desired tile rather than
    # running many tiny grid steps (~0.35 us each).
    return max_tile, _round_up(B_p, max_tile)


def policy_network_forward(state, params, *, block_b=1024,
                           matmul_dtype=jnp.bfloat16, approximate_gelu=True):
    """state: [B, in_features] float32. Returns logits [B, out_features] f32."""
    w1, b1, w2, b2, w3, b3 = params
    B, F_in = state.shape
    H = w1.shape[1]
    F_out = w3.shape[1]

    # Robust bias shape: accept (F,) or (1, F).
    b1 = jnp.asarray(b1, jnp.float32).reshape(1, H)
    b2 = jnp.asarray(b2, jnp.float32).reshape(1, H)
    b3 = jnp.asarray(b3, jnp.float32).reshape(1, F_out)

    # Cast weights once in the wrapper (halves weight DMA on the bf16 path and
    # removes per-grid-step casts). Activations stay f32 in HBM.
    w1 = w1.astype(matmul_dtype)
    w2 = w2.astype(matmul_dtype)
    w3 = w3.astype(matmul_dtype)

    tile_b, B_p = _plan_batch_tiling(B, block_b)
    if B_p != B:
        state = jnp.pad(state, ((0, B_p - B), (0, 0)))
    grid = (B_p // tile_b,)

    act_bytes = jnp.dtype(jnp.float32).itemsize
    w_bytes = jnp.dtype(matmul_dtype).itemsize
    flops = 2 * B_p * (F_in * H + H * H + H * F_out)
    transcendentals = 2 * B_p * H if approximate_gelu else 0
    bytes_accessed = (
        B_p * F_in * act_bytes                       # input stream
        + B_p * F_out * act_bytes                    # output stream (unpadded)
        + (F_in * H + H * H + H * F_out) * w_bytes   # weights (resident)
        + (2 * H + F_out) * act_bytes                # biases
    )

    kernel = functools.partial(_policy_mlp_kernel,
                               matmul_dtype=matmul_dtype,
                               approximate_gelu=approximate_gelu)

    out = pl.pallas_call(
        kernel,
        out_shape=jax.ShapeDtypeStruct((B_p, F_out), jnp.float32),
        grid_spec=pltpu.PrefetchScalarGridSpec(
            num_scalar_prefetch=0,
            grid=grid,
            in_specs=[
                # batch tile of the input
                pl.BlockSpec((tile_b, F_in), lambda i: (i, 0)),
                # weights / biases: full arrays, constant block index
                # (Pallas skips re-DMA for an unchanged block index).
                pl.BlockSpec((F_in, H), lambda i: (0, 0)),
                pl.BlockSpec((1, H), lambda i: (0, 0)),
                pl.BlockSpec((H, H), lambda i: (0, 0)),
                pl.BlockSpec((1, H), lambda i: (0, 0)),
                pl.BlockSpec((H, F_out), lambda i: (0, 0)),
                pl.BlockSpec((1, F_out), lambda i: (0, 0)),
            ],
            out_specs=pl.BlockSpec((tile_b, F_out), lambda i: (i, 0)),
        ),
        compiler_params=pltpu.CompilerParams(
            # batch axis is independent -> shards across v7x's 2 TensorCores
            dimension_semantics=("parallel",),
        ),
        cost_estimate=pl.CostEstimate(
            flops=flops,
            transcendentals=transcendentals,
            bytes_accessed=bytes_accessed,
        ),
    )(state, w1, b1, w2, b2, w3, b3)

    return out if B_p == B else out[:B]


def init_policy_params(key, in_features, out_features, hidden=128,
                       dtype=jnp.float32):
    """Deterministic init mimicking nn.Linear's U(-1/sqrt(fan_in), 1/sqrt(fan_in))."""
    ks = jax.random.split(key, 6)

    def lin(kw, kb, fan_in, fan_out):
        bound = 1.0 / jnp.sqrt(float(fan_in))
        w = jax.random.uniform(kw, (fan_in, fan_out), dtype, -bound, bound)
        b = jax.random.uniform(kb, (1, fan_out), dtype, -bound, bound)
        return w, b

    w1, b1 = lin(ks[0], ks[1], in_features, hidden)
    w2, b2 = lin(ks[2], ks[3], hidden, hidden)
    w3, b3 = lin(ks[4], ks[5], hidden, out_features)
    return (w1, b1, w2, b2, w3, b3)


def _reference_forward(state, params, approximate):
    w1, b1, w2, b2, w3, b3 = params
    h1 = jax.nn.gelu(state @ w1 + b1, approximate=approximate)
    h2 = jax.nn.gelu(h1 @ w2 + b2, approximate=approximate)
    return h2 @ w3 + b3


if __name__ == "__main__":
    key = jax.random.PRNGKey(0)
    k_param, k1, k2, k3 = jax.random.split(key, 4)

    IN_FEATURES, OUT_FEATURES = 32, 8
    params = init_policy_params(k_param, IN_FEATURES, OUT_FEATURES)

    # 1) Exact-parity path (f32 matmuls, erf GELU == PyTorch nn.GELU()).
    B1 = 8
    state1 = jax.random.normal(k1, (B1, IN_FEATURES), dtype=jnp.float32)
    out1 = jax.block_until_ready(policy_network_forward(
        state1, params, matmul_dtype=jnp.float32, approximate_gelu=False))
    ref1 = _reference_forward(state1, params, approximate=False)
    assert out1.shape == (B1, OUT_FEATURES)
    assert jnp.allclose(out1, ref1, atol=1e-4, rtol=1e-4), "exact f32 path mismatch"

    # 2) Default fast path (bf16 matmuls, tanh GELU); batch multiple of 8 ->
    #    no input pad, no output slice, 2 grid steps.
    B2 = 256
    state2 = jax.random.normal(k2, (B2, IN_FEATURES), dtype=jnp.float32)
    out2 = jax.block_until_ready(policy_network_forward(state2, params))
    ref2 = _reference_forward(state2, params, approximate=True)
    assert out2.shape == (B2, OUT_FEATURES)
    assert jnp.allclose(out2, ref2, atol=5e-2, rtol=5e-2), "bf16 default path mismatch"

    # 3) Ragged batch: exercises the divisor-tile / pad planning.
    B3 = 260
    state3 = jax.random.normal(k3, (B3, IN_FEATURES), dtype=jnp.float32)
    out3 = jax.block_until_ready(policy_network_forward(state3, params, block_b=128))
    ref3 = _reference_forward(state3, params, approximate=True)
    assert out3.shape == (B3, OUT_FEATURES)
    assert jnp.allclose(out3, ref3, atol=5e-2, rtol=5e-2), "ragged batch mismatch"

    print("KERNEL_OK")
</pallas_src>

<mosaic_0001>
module attributes {stable_mosaic.version = 11 : i64} {
  func.func @_policy_mlp_kernel(%arg0: i32, %arg1: memref<8x32xf32, #tpu.memory_space<vmem>>, %arg2: memref<32x128xf32, #tpu.memory_space<vmem>>, %arg3: memref<1x128xf32, #tpu.memory_space<vmem>>, %arg4: memref<128x128xf32, #tpu.memory_space<vmem>>, %arg5: memref<1x128xf32, #tpu.memory_space<vmem>>, %arg6: memref<128x8xf32, #tpu.memory_space<vmem>>, %arg7: memref<1x8xf32, #tpu.memory_space<vmem>>, %arg8: memref<8x8xf32, #tpu.memory_space<vmem>>) attributes {dimension_semantics = [#tpu.dimension_semantics<parallel>], iteration_bounds = array<i64: 1>, scalar_prefetch = 0 : i64, scratch_operands = 0 : i64, tpu.core_type = #tpu.core_type<tc>, window_params = [{transform_indices = @transform_0, window_bounds = array<i64: 8, 32>}, {pipeline_mode = #tpu.pipeline_mode<synchronous>, transform_indices = @transform_1, window_bounds = array<i64: 32, 128>}, {pipeline_mode = #tpu.pipeline_mode<synchronous>, transform_indices = @transform_2, window_bounds = array<i64: 1, 128>}, {pipeline_mode = #tpu.pipeline_mode<synchronous>, transform_indices = @transform_3, window_bounds = array<i64: 128, 128>}, {pipeline_mode = #tpu.pipeline_mode<synchronous>, transform_indices = @transform_4, window_bounds = array<i64: 1, 128>}, {pipeline_mode = #tpu.pipeline_mode<synchronous>, transform_indices = @transform_5, window_bounds = array<i64: 128, 8>}, {pipeline_mode = #tpu.pipeline_mode<synchronous>, transform_indices = @transform_6, window_bounds = array<i64: 1, 8>}, {transform_indices = @transform_7, window_bounds = array<i64: 8, 8>}]} {
    %c0 = arith.constant 0 : index
    %c0_0 = arith.constant 0 : index
    %0 = vector.load %arg1[%c0, %c0_0] : memref<8x32xf32, #tpu.memory_space<vmem>>, vector<8x32xf32>
    %c0_1 = arith.constant 0 : index
    %c0_2 = arith.constant 0 : index
    %1 = vector.load %arg2[%c0_1, %c0_2] : memref<32x128xf32, #tpu.memory_space<vmem>>, vector<32x128xf32>
    %cst = arith.constant dense<0.000000e+00> : vector<8x128xf32>
    %2 = tpu.matmul %0, %1, %cst {dimension_numbers = #tpu.dot_dimension_numbers<[1], [0], [0], [1], [0, 0, 1, 1], [], []>} : vector<8x32xf32>, vector<32x128xf32>, vector<8x128xf32> -> vector<8x128xf32>
    %c0_3 = arith.constant 0 : index
    %c0_4 = arith.constant 0 : index
    %3 = vector.load %arg3[%c0_3, %c0_4] : memref<1x128xf32, #tpu.memory_space<vmem>>, vector<1x128xf32>
    %4 = vector.broadcast %3 : vector<1x128xf32> to vector<8x128xf32>
    %5 = arith.addf %2, %4 : vector<8x128xf32>
    %cst_5 = arith.constant 5.000000e-01 : f32
    %6 = vector.broadcast %cst_5 : f32 to vector<8x128xf32>
    %7 = arith.mulf %6, %5 : vector<8x128xf32>
    %cst_6 = arith.constant 0.707106769 : f32
    %8 = vector.broadcast %cst_6 : f32 to vector<8x128xf32>
    %9 = arith.mulf %5, %8 : vector<8x128xf32>
    %10 = math.erf %9 : vector<8x128xf32>
    %cst_7 = arith.constant 1.000000e+00 : f32
    %11 = vector.broadcast %cst_7 : f32 to vector<8x128xf32>
    %12 = arith.addf %11, %10 : vector<8x128xf32>
    %13 = arith.mulf %7, %12 : vector<8x128xf32>
    %c0_8 = arith.constant 0 : index
    %c0_9 = arith.constant 0 : index
    %14 = vector.load %arg4[%c0_8, %c0_9] : memref<128x128xf32, #tpu.memory_space<vmem>>, vector<128x128xf32>
    %cst_10 = arith.constant dense<0.000000e+00> : vector<8x128xf32>
    %15 = tpu.matmul %13, %14, %cst_10 {dimension_numbers = #tpu.dot_dimension_numbers<[1], [0], [0], [1], [0, 0, 1, 1], [], []>} : vector<8x128xf32>, vector<128x128xf32>, vector<8x128xf32> -> vector<8x128xf32>
    %c0_11 = arith.constant 0 : index
    %c0_12 = arith.constant 0 : index
    %16 = vector.load %arg5[%c0_11, %c0_12] : memref<1x128xf32, #tpu.memory_space<vmem>>, vector<1x128xf32>
    %17 = vector.broadcast %16 : vector<1x128xf32> to vector<8x128xf32>
    %18 = arith.addf %15, %17 : vector<8x128xf32>
    %cst_13 = arith.constant 5.000000e-01 : f32
    %19 = vector.broadcast %cst_13 : f32 to vector<8x128xf32>
    %20 = arith.mulf %19, %18 : vector<8x128xf32>
    %cst_14 = arith.constant 0.707106769 : f32
    %21 = vector.broadcast %cst_14 : f32 to vector<8x128xf32>
    %22 = arith.mulf %18, %21 : vector<8x128xf32>
    %23 = math.erf %22 : vector<8x128xf32>
    %cst_15 = arith.constant 1.000000e+00 : f32
    %24 = vector.broadcast %cst_15 : f32 to vector<8x128xf32>
    %25 = arith.addf %24, %23 : vector<8x128xf32>
    %26 = arith.mulf %20, %25 : vector<8x128xf32>
    %c0_16 = arith.constant 0 : index
    %c0_17 = arith.constant 0 : index
    %27 = vector.load %arg6[%c0_16, %c0_17] : memref<128x8xf32, #tpu.memory_space<vmem>>, vector<128x8xf32>
    %cst_18 = arith.constant dense<0.000000e+00> : vector<8x8xf32>
    %28 = tpu.matmul %26, %27, %cst_18 {dimension_numbers = #tpu.dot_dimension_numbers<[1], [0], [0], [1], [0, 0, 1, 1], [], []>} : vector<8x128xf32>, vector<128x8xf32>, vector<8x8xf32> -> vector<8x8xf32>
    %c0_19 = arith.constant 0 : index
    %c0_20 = arith.constant 0 : index
    %29 = vector.load %arg7[%c0_19, %c0_20] : memref<1x8xf32, #tpu.memory_space<vmem>>, vector<1x8xf32>
    %30 = vector.broadcast %29 : vector<1x8xf32> to vector<8x8xf32>
    %31 = arith.addf %28, %30 : vector<8x8xf32>
    %c0_21 = arith.constant 0 : index
    %c0_22 = arith.constant 0 : index
    %32 = vector.load %arg8[%c0_21, %c0_22] : memref<8x8xf32, #tpu.memory_space<vmem>>, vector<8x8xf32>
    tpu.vector_store %arg8[%c0_21, %c0_22], %31 {strides = array<i32>} : memref<8x8xf32, #tpu.memory_space<vmem>>, vector<8x8xf32>,
    return
  }
  func.func @transform_0(%arg0: i32) -> (i32, i32) {
    %c0_i32 = arith.constant 0 : i32
    %c0_i32_0 = arith.constant 0 : i32
    return %arg0, %c0_i32 : i32, i32
  }
  func.func @transform_1(%arg0: i32) -> (i32, i32) {
    %c0_i32 = arith.constant 0 : i32
    %c0_i32_0 = arith.constant 0 : i32
    %c0_i32_1 = arith.constant 0 : i32
    return %c0_i32, %c0_i32_0 : i32, i32
  }
  func.func @transform_2(%arg0: i32) -> (i32, i32) {
    %c0_i32 = arith.constant 0 : i32
    %c0_i32_0 = arith.constant 0 : i32
    %c0_i32_1 = arith.constant 0 : i32
    return %c0_i32, %c0_i32_0 : i32, i32
  }
  func.func @transform_3(%arg0: i32) -> (i32, i32) {
    %c0_i32 = arith.constant 0 : i32
    %c0_i32_0 = arith.constant 0 : i32
    %c0_i32_1 = arith.constant 0 : i32
    return %c0_i32, %c0_i32_0 : i32, i32
  }
  func.func @transform_4(%arg0: i32) -> (i32, i32) {
    %c0_i32 = arith.constant 0 : i32
    %c0_i32_0 = arith.constant 0 : i32
    %c0_i32_1 = arith.constant 0 : i32
    return %c0_i32, %c0_i32_0 : i32, i32
  }
  func.func @transform_5(%arg0: i32) -> (i32, i32) {
    %c0_i32 = arith.constant 0 : i32
    %c0_i32_0 = arith.constant 0 : i32
    %c0_i32_1 = arith.constant 0 : i32
    return %c0_i32, %c0_i32_0 : i32, i32
  }
  func.func @transform_6(%arg0: i32) -> (i32, i32) {
    %c0_i32 = arith.constant 0 : i32
    %c0_i32_0 = arith.constant 0 : i32
    %c0_i32_1 = arith.constant 0 : i32
    return %c0_i32, %c0_i32_0 : i32, i32
  }
  func.func @transform_7(%arg0: i32) -> (i32, i32) {
    %c0_i32 = arith.constant 0 : i32
    %c0_i32_0 = arith.constant 0 : i32
    return %arg0, %c0_i32 : i32, i32
  }
}

</mosaic_0001>

<llo_original>
// kernel: tpu_custom_call.1
$region0: #{tpu_custom_call.1}
  #allocation0 [shape = 'u32[]', space=smem, size = 0x4, offset = 0x4, fixed_abs, tag = 'smem constant byte address 0x4 - core index']
  #allocation1 [shape = 'u32[144,128]{1,0:T(1,128)}', space=vmem, size = 0x12000, scoped, tag = 'internal scratch']
  %s0 = inlined_call_operand.vmem [shape: f32[8,32], index: 0, kind: input, shape index: {}]
  %s1 = inlined_call_operand.hbm [shape: f32[32,128], index: 1, kind: input, shape index: {}]
  %s2 = inlined_call_operand.vmem [shape: f32[1,128], index: 2, kind: input, shape index: {}]
  %s3 = inlined_call_operand.vmem [shape: f32[128,128], index: 3, kind: input, shape index: {}]
  %s4 = inlined_call_operand.vmem [shape: f32[1,128], index: 4, kind: input, shape index: {}]
  %s5 = inlined_call_operand.vmem [shape: f32[128,8], index: 5, kind: input, shape index: {}]
  %s6 = inlined_call_operand.vmem [shape: f32[1,8], index: 6, kind: input, shape index: {}]
  %s7 = inlined_call_operand.hbm [shape: f32[8,8], index: 7, kind: output, shape index: {}]
  %s8 = sld [smem:[#allocation0]]
  $region42: #{tpu_custom_call.1} parent=0
    _
  %s10 = ssub.s32 1, %s8
  %s11 = scalar_select 0, %s10, %s8
  $region1: #{tpu_custom_call.1} parent=0
    #allocation2 [shape = 'u8[16384]{0}', space=vmem, size = 0x4000, scoped, tag = 'input window, operand 1, single buffered']
    #allocation3 [shape = 's32[1]{0}', space=sflag, size = 0x4, scoped, tag = 'scoped memory for tpu_custom_call.1']
    #allocation4 [shape = 's32[1]{0}', space=sflag, size = 0x4, scoped, tag = 'scoped memory for tpu_custom_call.1']
    #allocation5 [shape = 'u8[4096]{0}', space=vmem, size = 0x1000, scoped, tag = 'output window, operand 0, single buffered']
    %12 = vsyncpa [#allocation3], 0
    %13 = vsyncpa [#allocation4], 0
    // Predicated region
    $region2: #{tpu_custom_call.1} parent=1 // pred_check
      _
    $region3: #{tpu_custom_call.1} parent=1 // pred_check_branch
      %15 = sbr.rel (0) target = $region5
    $region4: #{tpu_custom_call.1} parent=1 // pred_region
      _
    $region5: #{tpu_custom_call.1} parent=1 // pred_fallthru
      _
    // Predicated region
    $region6: #{tpu_custom_call.1} parent=1 // pred_check
      _
    $region7: #{tpu_custom_call.1} parent=1 // pred_check_branch
      %17 = sbr.rel (0) target = $region9
    $region8: #{tpu_custom_call.1} parent=1 // pred_region
      %s19 = ssub.s32 512, 512
      %20 = vsyncadd [#allocation3], %s19
      %s21 = sshll.u32 [#allocation2], 4
      %s22 = int_to_ptr.vmem [resolvable:$true] %s21
      %27 = dma.hbm_to_vmem [thread:$0]  %s1, 512, %s22, [#allocation3], 128, 128, 8
    $region9: #{tpu_custom_call.1} parent=1 // pred_fallthru
      _
    // Predicated region
    $region10: #{tpu_custom_call.1} parent=1 // pred_check
      _
    $region11: #{tpu_custom_call.1} parent=1 // pred_check_branch
      %29 = sbr.rel (0) target = $region13
    $region12: #{tpu_custom_call.1} parent=1 // pred_region
      _
    $region13: #{tpu_custom_call.1} parent=1 // pred_fallthru
      _
    // Predicated region
    $region14: #{tpu_custom_call.1} parent=1 // pred_check
      _
    $region15: #{tpu_custom_call.1} parent=1 // pred_check_branch
      %31 = sbr.rel (0) target = $region17
    $region16: #{tpu_custom_call.1} parent=1 // pred_region
      _
    $region17: #{tpu_custom_call.1} parent=1 // pred_fallthru
      _
    // Predicated region
    $region18: #{tpu_custom_call.1} parent=1 // pred_check
      _
    $region19: #{tpu_custom_call.1} parent=1 // pred_check_branch
      %33 = sbr.rel (0) target = $region21
    $region20: #{tpu_custom_call.1} parent=1 // pred_region
      _
    $region21: #{tpu_custom_call.1} parent=1 // pred_fallthru
      _
    // Predicated region
    $region22: #{tpu_custom_call.1} parent=1 // pred_check
      _
    $region23: #{tpu_custom_call.1} parent=1 // pred_check_branch
      %35 = sbr.rel (0) target = $region25
    $region24: #{tpu_custom_call.1} parent=1 // pred_region
      _
    $region25: #{tpu_custom_call.1} parent=1 // pred_fallthru
      _
    // Predicated region
    $region26: #{tpu_custom_call.1} parent=1 // pred_check
      _
    $region27: #{tpu_custom_call.1} parent=1 // pred_check_branch
      %37 = sbr.rel (0) target = $region29
    $region28: #{tpu_custom_call.1} parent=1 // pred_region
      _
    $region29: #{tpu_custom_call.1} parent=1 // pred_fallthru
      _
    // Predicated region
    $region30: #{tpu_custom_call.1} parent=1 // pred_check
      _
    $region31: #{tpu_custom_call.1} parent=1 // pred_check_branch
      %39 = sbr.rel (0) target = $region33
    $region32: #{tpu_custom_call.1} parent=1 // pred_region
      %40 = dma.done [#allocation3], 512
    $region33: #{tpu_custom_call.1} parent=1 // pred_fallthru
      _
    %v41 = vld [vmem:[%s0] sm:$0xff]
    %v42 = vld [vmem:[#allocation2] sm:$0xff]
    %v43 = vld [vmem:[#allocation2 + $0x8] sm:$0xff]
    %v44 = vld [vmem:[#allocation2 + $0x10] sm:$0xff]
    %v45 = vld [vmem:[#allocation2 + $0x18] sm:$0xff]
    %v46 = vld [vmem:[%s2] sm:$0x1]
    %v48 = vlaneseq
    %v49 = vshrl.u32 %v48, 7
    %v50 = vsub.s32 0, %v49
    %v51 = vrot.slane %v46, %v50
    %vm53 = vcmask 261120
    %v55 = vsel %vm53, %v41, 0
    %57 = vmatprep.subr.mxu0 0.0
    %58 = vmatpush1.msra.mxu0 %v42
    %59 = vmatprep.subr.mxu0 0.0
    %60 = vmatpush1.msra.mxu0 %v43
    %61 = vmatprep.subr.mxu0 0.0
    %62 = vmatpush1.msra.mxu0 %v44
    %63 = vmatprep.subr.mxu0 0.0
    %64 = vmatpush1.msra.mxu0 %v45
    %65 = vmatprep.subr.mxu0 0.0
    %66 = vmatpush1.msra.mxu0 0.0
    %67 = vmatprep.subr.mxu0 0.0
    %68 = vmatpush1.msra.mxu0 0.0
    %69 = vmatprep.subr.mxu0 0.0
    %70 = vmatpush1.msra.mxu0 0.0
    %71 = vmatprep.subr.mxu0 0.0
    %72 = vmatpush1.msra.mxu0 0.0
    %73 = vmatprep.subr.mxu0 0.0
    %74 = vmatpush1.msra.mxu0 0.0
    %75 = vmatprep.subr.mxu0 0.0
    %76 = vmatpush1.msra.mxu0 0.0
    %77 = vmatprep.subr.mxu0 0.0
    %78 = vmatpush1.msra.mxu0 0.0
    %79 = vmatprep.subr.mxu0 0.0
    %80 = vmatpush1.msra.mxu0 0.0
    %81 = vmatprep.subr.mxu0 0.0
    %82 = vmatpush1.msra.mxu0 0.0
    %83 = vmatprep.subr.mxu0 0.0
    %84 = vmatpush1.msra.mxu0 0.0
    %85 = vmatprep.subr.mxu0 0.0
    %86 = vmatpush1.msra.mxu0 0.0
    %87 = vmatprep.subr.mxu0 0.0
    %88 = vmatpush1.msra.mxu0 0.0
    %89 = vmatprep.subr.mxu0 0.0
    %90 = vmatpush1.msra.mxu0 0.0
    %91 = vmatprep.subr.mxu0 0.0
    %92 = vmatpush1.msra.mxu0 0.0
    %93 = vmatprep.subr.mxu0 0.0
    %94 = vmatpush1.msra.mxu0 0.0
    %95 = vmatprep.subr.mxu0 0.0
    %96 = vmatpush1.msra.mxu0 0.0
    %97 = vmatprep.subr.mxu0 0.0
    %98 = vmatpush1.msra.mxu0 0.0
    %99 = vmatprep.subr.mxu0 0.0
    %100 = vmatpush1.msra.mxu0 0.0
    %101 = vmatprep.subr.mxu0 0.0
    %102 = vmatpush1.msra.mxu0 0.0
    %103 = vmatprep.subr.mxu0 0.0
    %104 = vmatpush1.msra.mxu0 0.0
    %105 = vmatprep.subr.mxu0 0.0
    %106 = vmatpush1.msra.mxu0 0.0
    %107 = vmatprep.subr.mxu0 0.0
    %108 = vmatpush1.msra.mxu0 0.0
    %109 = vmatprep.subr.mxu0 0.0
    %110 = vmatpush1.msra.mxu0 0.0
    %111 = vmatprep.subr.mxu0 0.0
    %112 = vmatpush1.msra.mxu0 0.0
    %113 = vmatprep.subr.mxu0 0.0
    %114 = vmatpush1.msra.mxu0 0.0
    %115 = vmatprep.subr.mxu0 0.0
    %116 = vmatpush1.msra.mxu0 0.0
    %117 = vmatprep.subr.mxu0 0.0
    %118 = vmatpush1.msra.mxu0 0.0
    %119 = vmatprep.subr.mxu0 0.0
    %120 = vmatpush1.msra.mxu0 0.0
    %121 = vmatprep.mubr.f32.mxu0 0.0
    %122 = vmatmul.mubr.f32.gmra.mrb[0].mxu0 %v55
    %v123 = vpop.f32.mrb[0].mxu0
    %v124 = vadd.f32 %v51, %v123
    %v125 = vpop.f32.mrb[0].mxu0
    %126 = vdwg.mxu0
    %v127 = vmul.f32 %v124, 0.5
    %v128 = vmul.f32 %v124, 0.70710677
    %v129 = verf.f32.pop %v128
    %v130 = vadd.f32 %v129, 1.0
    %v131 = vmul.f32 %v127, %v130
    %v132 = vld [vmem:[%s3] sm:$0xff]
    %v133 = vld [vmem:[%s3 + $0x8] sm:$0xff]
    %v134 = vld [vmem:[%s3 + $0x10] sm:$0xff]
    %v135 = vld [vmem:[%s3 + $0x18] sm:$0xff]
    %v136 = vld [vmem:[%s3 + $0x20] sm:$0xff]
    %v137 = vld [vmem:[%s3 + $0x28] sm:$0xff]
    %v138 = vld [vmem:[%s3 + $0x30] sm:$0xff]
    %v139 = vld [vmem:[%s3 + $0x38] sm:$0xff]
    %v140 = vld [vmem:[%s3 + $0x40] sm:$0xff]
    %v141 = vld [vmem:[%s3 + $0x48] sm:$0xff]
    %v142 = vld [vmem:[%s3 + $0x50] sm:$0xff]
    %v143 = vld [vmem:[%s3 + $0x58] sm:$0xff]
    %v144 = vld [vmem:[%s3 + $0x60] sm:$0xff]
    %v145 = vld [vmem:[%s3 + $0x68] sm:$0xff]
    %v146 = vld [vmem:[%s3 + $0x70] sm:$0xff]
    %v147 = vld [vmem:[%s3 + $0x78] sm:$0xff]
    %v148 = vld [vmem:[%s4] sm:$0x1]
    %v150 = vlaneseq
    %v151 = vshrl.u32 %v150, 7
    %v152 = vsub.s32 0, %v151
    %v153 = vrot.slane %v148, %v152
    %155 = vmatprep.subr.mxu0 0.0
    %156 = vmatpush1.msra.mxu0 %v132
    %157 = vmatprep.subr.mxu0 0.0
    %158 = vmatpush1.msra.mxu0 %v133
    %159 = vmatprep.subr.mxu0 0.0
    %160 = vmatpush1.msra.mxu0 %v134
    %161 = vmatprep.subr.mxu0 0.0
    %162 = vmatpush1.msra.mxu0 %v135
    %163 = vmatprep.subr.mxu0 0.0
    %164 = vmatpush1.msra.mxu0 %v136
    %165 = vmatprep.subr.mxu0 0.0
    %166 = vmatpush1.msra.mxu0 %v137
    %167 = vmatprep.subr.mxu0 0.0
    %168 = vmatpush1.msra.mxu0 %v138
    %169 = vmatprep.subr.mxu0 0.0
    %170 = vmatpush1.msra.mxu0 %v139
    %171 = vmatprep.subr.mxu0 0.0
    %172 = vmatpush1.msra.mxu0 %v140
    %173 = vmatprep.subr.mxu0 0.0
    %174 = vmatpush1.msra.mxu0 %v141
    %175 = vmatprep.subr.mxu0 0.0
    %176 = vmatpush1.msra.mxu0 %v142
    %177 = vmatprep.subr.mxu0 0.0
    %178 = vmatpush1.msra.mxu0 %v143
    %179 = vmatprep.subr.mxu0 0.0
    %180 = vmatpush1.msra.mxu0 %v144
    %181 = vmatprep.subr.mxu0 0.0
    %182 = vmatpush1.msra.mxu0 %v145
    %183 = vmatprep.subr.mxu0 0.0
    %184 = vmatpush1.msra.mxu0 %v146
    %185 = vmatprep.subr.mxu0 0.0
    %186 = vmatpush1.msra.mxu0 %v147
    %187 = vmatprep.subr.mxu0 0.0
    %188 = vmatpush1.msra.mxu0 0.0
    %189 = vmatprep.subr.mxu0 0.0
    %190 = vmatpush1.msra.mxu0 0.0
    %191 = vmatprep.subr.mxu0 0.0
    %192 = vmatpush1.msra.mxu0 0.0
    %193 = vmatprep.subr.mxu0 0.0
    %194 = vmatpush1.msra.mxu0 0.0
    %195 = vmatprep.subr.mxu0 0.0
    %196 = vmatpush1.msra.mxu0 0.0
    %197 = vmatprep.subr.mxu0 0.0
    %198 = vmatpush1.msra.mxu0 0.0
    %199 = vmatprep.subr.mxu0 0.0
    %200 = vmatpush1.msra.mxu0 0.0
    %201 = vmatprep.subr.mxu0 0.0
    %202 = vmatpush1.msra.mxu0 0.0
    %203 = vmatprep.subr.mxu0 0.0
    %204 = vmatpush1.msra.mxu0 0.0
    %205 = vmatprep.subr.mxu0 0.0
    %206 = vmatpush1.msra.mxu0 0.0
    %207 = vmatprep.subr.mxu0 0.0
    %208 = vmatpush1.msra.mxu0 0.0
    %209 = vmatprep.subr.mxu0 0.0
    %210 = vmatpush1.msra.mxu0 0.0
    %211 = vmatprep.subr.mxu0 0.0
    %212 = vmatpush1.msra.mxu0 0.0
    %213 = vmatprep.subr.mxu0 0.0
    %214 = vmatpush1.msra.mxu0 0.0
    %215 = vmatprep.subr.mxu0 0.0
    %216 = vmatpush1.msra.mxu0 0.0
    %217 = vmatprep.subr.mxu0 0.0
    %218 = vmatpush1.msra.mxu0 0.0
    %219 = vmatprep.mubr.f32.mxu0 0.0
    %220 = vmatmul.mubr.f32.gmra.mrb[0].mxu0 %v131
    %v221 = vpop.f32.mrb[0].mxu0
    %v222 = vadd.f32 %v153, %v221
    %v223 = vpop.f32.mrb[0].mxu0
    %224 = vdwg.mxu0
    %v225 = vmul.f32 %v222, 0.5
    %v226 = vmul.f32 %v222, 0.70710677
    %v227 = verf.f32.pop %v226
    %v228 = vadd.f32 %v227, 1.0
    %v229 = vmul.f32 %v225, %v228
    %v230 = vld [vmem:[%s5] sm:$0xff]
    %v231 = vld [vmem:[%s5 + $0x8] sm:$0xff]
    %v232 = vld [vmem:[%s5 + $0x10] sm:$0xff]
    %v233 = vld [vmem:[%s5 + $0x18] sm:$0xff]
    %v234 = vld [vmem:[%s5 + $0x20] sm:$0xff]
    %v235 = vld [vmem:[%s5 + $0x28] sm:$0xff]
    %v236 = vld [vmem:[%s5 + $0x30] sm:$0xff]
    %v237 = vld [vmem:[%s5 + $0x38] sm:$0xff]
    %v238 = vld [vmem:[%s5 + $0x40] sm:$0xff]
    %v239 = vld [vmem:[%s5 + $0x48] sm:$0xff]
    %v240 = vld [vmem:[%s5 + $0x50] sm:$0xff]
    %v241 = vld [vmem:[%s5 + $0x58] sm:$0xff]
    %v242 = vld [vmem:[%s5 + $0x60] sm:$0xff]
    %v243 = vld [vmem:[%s5 + $0x68] sm:$0xff]
    %v244 = vld [vmem:[%s5 + $0x70] sm:$0xff]
    %v245 = vld [vmem:[%s5 + $0x78] sm:$0xff]
    %v246 = vld [vmem:[%s6] sm:$0x1]
    %v248 = vlaneseq
    %v249 = vshrl.u32 %v248, 7
    %v250 = vsub.s32 0, %v249
    %v251 = vrot.slane %v246, %v250
    %253 = vmatprep.subr.mxu0 0.0
    %254 = vmatpush1.msra.mxu0 %v230
    %255 = vmatprep.subr.mxu0 0.0
    %256 = vmatpush1.msra.mxu0 %v231
    %257 = vmatprep.subr.mxu0 0.0
    %258 = vmatpush1.msra.mxu0 %v232
    %259 = vmatprep.subr.mxu0 0.0
    %260 = vmatpush1.msra.mxu0 %v233
    %261 = vmatprep.subr.mxu0 0.0
    %262 = vmatpush1.msra.mxu0 %v234
    %263 = vmatprep.subr.mxu0 0.0
    %264 = vmatpush1.msra.mxu0 %v235
    %265 = vmatprep.subr.mxu0 0.0
    %266 = vmatpush1.msra.mxu0 %v236
    %267 = vmatprep.subr.mxu0 0.0
    %268 = vmatpush1.msra.mxu0 %v237
    %269 = vmatprep.subr.mxu0 0.0
    %270 = vmatpush1.msra.mxu0 %v238
    %271 = vmatprep.subr.mxu0 0.0
    %272 = vmatpush1.msra.mxu0 %v239
    %273 = vmatprep.subr.mxu0 0.0
    %274 = vmatpush1.msra.mxu0 %v240
    %275 = vmatprep.subr.mxu0 0.0
    %276 = vmatpush1.msra.mxu0 %v241
    %277 = vmatprep.subr.mxu0 0.0
    %278 = vmatpush1.msra.mxu0 %v242
    %279 = vmatprep.subr.mxu0 0.0
    %280 = vmatpush1.msra.mxu0 %v243
    %281 = vmatprep.subr.mxu0 0.0
    %282 = vmatpush1.msra.mxu0 %v244
    %283 = vmatprep.subr.mxu0 0.0
    %284 = vmatpush1.msra.mxu0 %v245
    %285 = vmatprep.subr.mxu0 0.0
    %286 = vmatpush1.msra.mxu0 0.0
    %287 = vmatprep.subr.mxu0 0.0
    %288 = vmatpush1.msra.mxu0 0.0
    %289 = vmatprep.subr.mxu0 0.0
    %290 = vmatpush1.msra.mxu0 0.0
    %291 = vmatprep.subr.mxu0 0.0
    %292 = vmatpush1.msra.mxu0 0.0
    %293 = vmatprep.subr.mxu0 0.0
    %294 = vmatpush1.msra.mxu0 0.0
    %295 = vmatprep.subr.mxu0 0.0
    %296 = vmatpush1.msra.mxu0 0.0
    %297 = vmatprep.subr.mxu0 0.0
    %298 = vmatpush1.msra.mxu0 0.0
    %299 = vmatprep.subr.mxu0 0.0
    %300 = vmatpush1.msra.mxu0 0.0
    %301 = vmatprep.subr.mxu0 0.0
    %302 = vmatpush1.msra.mxu0 0.0
    %303 = vmatprep.subr.mxu0 0.0
    %304 = vmatpush1.msra.mxu0 0.0
    %305 = vmatprep.subr.mxu0 0.0
    %306 = vmatpush1.msra.mxu0 0.0
    %307 = vmatprep.subr.mxu0 0.0
    %308 = vmatpush1.msra.mxu0 0.0
    %309 = vmatprep.subr.mxu0 0.0
    %310 = vmatpush1.msra.mxu0 0.0
    %311 = vmatprep.subr.mxu0 0.0
    %312 = vmatpush1.msra.mxu0 0.0
    %313 = vmatprep.subr.mxu0 0.0
    %314 = vmatpush1.msra.mxu0 0.0
    %315 = vmatprep.subr.mxu0 0.0
    %316 = vmatpush1.msra.mxu0 0.0
    %317 = vmatprep.mubr.f32.mxu0 0.0
    %318 = vmatmul.mubr.f32.gmra.mrb[0].mxu0 %v229
    %v319 = vpop.f32.mrb[0].mxu0
    %v320 = vadd.f32 %v251, %v319
    %v321 = vpop.f32.mrb[0].mxu0
    %322 = vdwg.mxu0
    %vm323 = vcmask 64512
    %324 = vst.msk [vmem:[#allocation5] sm:$0xff] %vm323, %v320
    // Predicated region
    $region34: #{tpu_custom_call.1} parent=1 // pred_check
      _
    $region35: #{tpu_custom_call.1} parent=1 // pred_check_branch
      %326 = sbr.rel (0) target = $region37
    $region36: #{tpu_custom_call.1} parent=1 // pred_region
      %s328 = ssub.s32 128, 128
      %329 = vsyncadd [#allocation4], %s328
      %s331 = sshll.u32 [#allocation5], 4
      %s332 = int_to_ptr.vmem [resolvable:$true] %s331
      %334 = dma.vmem_to_hbm [thread:$0]  %s332, 128, %s7, [#allocation4]
    $region37: #{tpu_custom_call.1} parent=1 // pred_fallthru
      _
    // Predicated region
    $region38: #{tpu_custom_call.1} parent=1 // pred_check
      _
    $region39: #{tpu_custom_call.1} parent=1 // pred_check_branch
      %336 = sbr.rel (0) target = $region41
    $region40: #{tpu_custom_call.1} parent=1 // pred_region
      %337 = dma.done [#allocation4], 128
    $region41: #{tpu_custom_call.1} parent=1 // pred_fallthru
      _
    %338 = vsyncpa [#allocation3], 1
    %339 = vsyncpa [#allocation4], 1

</llo_original>
